<compile_context>
chip_gen: v6e
topology: v6e:2x2x1
jax: 0.10.0
libtpu: 0.0.40
codegen_flags: <defaults>
</compile_context>

<pallas_src>
import functools

import jax
import jax.numpy as jnp
from jax.experimental import pallas as pl
from jax.experimental.pallas import tpu as pltpu

LANE = 128  # lane-dense output width unit


def _linear_sigmoid_kernel(x_ref, w_ref, b_ref, o_ref):
    # x_ref: (B, In)  w_ref: (In, OutPad)  b_ref: (1, OutPad)  o_ref: (B, OutPad)
    acc = jnp.dot(x_ref[...], w_ref[...], preferred_element_type=jnp.float32)
    acc = acc + b_ref[...]                       # broadcast bias over batch
    # sigmoid(z) = 0.5 + 0.5 * tanh(0.5 * z): one EUP transcendental + 2 VPU ops
    sig = 0.5 + 0.5 * jnp.tanh(0.5 * acc)
    o_ref[...] = sig.astype(o_ref.dtype)


def prepare_params(weight, bias, lane=LANE):
    """One-time parameter transform (do NOT call per forward).

    weight: (Out, In) float32 (PyTorch nn.Linear convention)
    bias:   (Out,)    float32
    Returns (w_t_padded (In, OutPad), b_padded (1, OutPad)) with
    OutPad = round_up(Out, 128) for lane-dense unmasked stores.
    """
    out_f, in_f = weight.shape
    out_pad = ((out_f + lane - 1) // lane) * lane
    w_t = weight.T                                           # (In, Out)
    w_t_padded = jnp.zeros((in_f, out_pad), weight.dtype).at[:, :out_f].set(w_t)
    b_padded = jnp.zeros((1, out_pad), bias.dtype).at[0, :out_f].set(bias)
    return w_t_padded, b_padded


@jax.jit
def multiple_net_child_forward_padded(x, w_t_padded, b_padded):
    """sigmoid(x @ W^T + b), returned lane-dense as (B, OutPad).

    Padded columns hold sigmoid(0) = 0.5 and are inert for the kept columns.
    Keep this slab flowing downstream; slice only at the final consumer.
    """
    B, in_f = x.shape
    out_pad = w_t_padded.shape[1]
    itemsize = jnp.dtype(x.dtype).itemsize

    cost = pl.CostEstimate(
        flops=2 * B * in_f * out_pad,
        transcendentals=B * out_pad,
        bytes_accessed=(B * in_f + in_f * out_pad + out_pad + B * out_pad) * itemsize,
    )

    return pl.pallas_call(
        _linear_sigmoid_kernel,
        out_shape=jax.ShapeDtypeStruct((B, out_pad), x.dtype),
        in_specs=[
            pl.BlockSpec(memory_space=pltpu.MemorySpace.VMEM),
            pl.BlockSpec(memory_space=pltpu.MemorySpace.VMEM),
            pl.BlockSpec(memory_space=pltpu.MemorySpace.VMEM),
        ],
        out_specs=pl.BlockSpec(memory_space=pltpu.MemorySpace.VMEM),
        cost_estimate=cost,
    )(x, w_t_padded, b_padded)


@functools.partial(jax.jit, static_argnames=("out_features",))
def multiple_net_child_forward(x, w_t_padded, b_padded, out_features):
    """Final-consumer view matching the PyTorch module: (B, out_features)."""
    out_full = multiple_net_child_forward_padded(x, w_t_padded, b_padded)
    return out_full[:, :out_features]


if __name__ == "__main__":
    input_size = 10
    output_size = 4
    batch = 8

    key = jax.random.PRNGKey(0)
    kx, kw, kb = jax.random.split(key, 3)

    # Deterministic inputs (shapes match nn.Linear(input_size, output_size))
    x = jax.random.normal(kx, (batch, input_size), dtype=jnp.float32)
    weight = jax.random.normal(kw, (output_size, input_size), dtype=jnp.float32) * 0.1
    bias = jax.random.normal(kb, (output_size,), dtype=jnp.float32) * 0.1

    # One-time parameter prep (transpose + pad Out -> 128 lanes)
    w_t_padded, b_padded = prepare_params(weight, bias)
    w_t_padded = jax.block_until_ready(w_t_padded)
    b_padded = jax.block_until_ready(b_padded)

    # Lane-dense slab (what downstream consumers should keep using)
    out_padded = multiple_net_child_forward_padded(x, w_t_padded, b_padded)
    out_padded = jax.block_until_ready(out_padded)

    # Final-consumer slice + correctness check against plain JAX
    out = multiple_net_child_forward(x, w_t_padded, b_padded, output_size)
    out = jax.block_until_ready(out)

    ref = jax.nn.sigmoid(x @ weight.T + bias)
    assert out_padded.shape == (batch, LANE)
    assert out.shape == (batch, output_size)
    assert jnp.allclose(out, ref, atol=1e-5, rtol=1e-5)

    print("KERNEL_OK")
</pallas_src>

<mosaic_0001>
module attributes {stable_mosaic.version = 11 : i64} {
  func.func @_linear_sigmoid_kernel(%arg0: memref<8x10xf32, #tpu.memory_space<vmem>>, %arg1: memref<10x128xf32, #tpu.memory_space<vmem>>, %arg2: memref<1x128xf32, #tpu.memory_space<vmem>>, %arg3: memref<8x128xf32, #tpu.memory_space<vmem>>) attributes {dimension_semantics = [], scalar_prefetch = 0 : i64, scratch_operands = 0 : i64, tpu.core_type = #tpu.core_type<tc>} {
    %c0 = arith.constant 0 : index
    %c0_0 = arith.constant 0 : index
    %0 = vector.load %arg0[%c0, %c0_0] : memref<8x10xf32, #tpu.memory_space<vmem>>, vector<8x10xf32>
    %c0_1 = arith.constant 0 : index
    %c0_2 = arith.constant 0 : index
    %1 = vector.load %arg1[%c0_1, %c0_2] : memref<10x128xf32, #tpu.memory_space<vmem>>, vector<10x128xf32>
    %cst = arith.constant dense<0.000000e+00> : vector<8x128xf32>
    %2 = tpu.matmul %0, %1, %cst {dimension_numbers = #tpu.dot_dimension_numbers<[1], [0], [0], [1], [0, 0, 1, 1], [], []>} : vector<8x10xf32>, vector<10x128xf32>, vector<8x128xf32> -> vector<8x128xf32>
    %c0_3 = arith.constant 0 : index
    %c0_4 = arith.constant 0 : index
    %3 = vector.load %arg2[%c0_3, %c0_4] : memref<1x128xf32, #tpu.memory_space<vmem>>, vector<1x128xf32>
    %4 = vector.broadcast %3 : vector<1x128xf32> to vector<8x128xf32>
    %5 = arith.addf %2, %4 : vector<8x128xf32>
    %cst_5 = arith.constant 5.000000e-01 : f32
    %6 = vector.broadcast %cst_5 : f32 to vector<8x128xf32>
    %7 = arith.mulf %6, %5 : vector<8x128xf32>
    %8 = math.tanh %7 : vector<8x128xf32>
    %cst_6 = arith.constant 5.000000e-01 : f32
    %9 = vector.broadcast %cst_6 : f32 to vector<8x128xf32>
    %10 = arith.mulf %9, %8 : vector<8x128xf32>
    %cst_7 = arith.constant 5.000000e-01 : f32
    %11 = vector.broadcast %cst_7 : f32 to vector<8x128xf32>
    %12 = arith.addf %11, %10 : vector<8x128xf32>
    %c0_8 = arith.constant 0 : index
    %c0_9 = arith.constant 0 : index
    %13 = vector.load %arg3[%c0_8, %c0_9] : memref<8x128xf32, #tpu.memory_space<vmem>>, vector<8x128xf32>
    tpu.vector_store %arg3[%c0_8, %c0_9], %12 {strides = array<i32>} : memref<8x128xf32, #tpu.memory_space<vmem>>, vector<8x128xf32>,
    return
  }
}

</mosaic_0001>

<llo_original>
// kernel: multiple_net_child_forward_padded.1
$region0: #{multiple_net_child_forward_padded.1}
  #allocation0 [shape = 'u32[]', space=smem, size = 0x4, offset = 0x4, fixed_abs, tag = 'smem constant byte address 0x4 - core index']
  #allocation1 [shape = 'u32[144,128]{1,0:T(1,128)}', space=vmem, size = 0x12000, scoped, tag = 'internal scratch']
  %s0 = inlined_call_operand.hbm [shape: f32[8,10], index: 0, kind: input, shape index: {}]
  %s1 = inlined_call_operand.hbm [shape: f32[10,128], index: 1, kind: input, shape index: {}]
  %s2 = inlined_call_operand.vmem [shape: f32[1,128], index: 2, kind: input, shape index: {}]
  %s3 = inlined_call_operand.hbm [shape: f32[8,128], index: 3, kind: output, shape index: {}]
  %s4 = sld [smem:[#allocation0]]
  $region30: #{multiple_net_child_forward_padded.1} parent=0
    _
  %s6 = ssub.s32 1, %s4
  %s7 = scalar_select 0, %s6, %s4
  $region1: #{multiple_net_child_forward_padded.1} parent=0
    #allocation2 [shape = 'u8[4096]{0}', space=vmem, size = 0x1000, scoped, tag = 'input window, operand 0, single buffered']
    #allocation3 [shape = 's32[1]{0}', space=sflag, size = 0x4, scoped, tag = 'scoped memory for multiple_net_child_forward_padded.1']
    #allocation4 [shape = 's32[1]{0}', space=sflag, size = 0x4, scoped, tag = 'scoped memory for multiple_net_child_forward_padded.1']
    #allocation5 [shape = 'u8[8192]{0}', space=vmem, size = 0x2000, scoped, tag = 'input window, operand 1, single buffered']
    #allocation6 [shape = 's32[1]{0}', space=sflag, size = 0x4, scoped, tag = 'scoped memory for multiple_net_child_forward_padded.1']
    #allocation7 [shape = 'u8[4096]{0}', space=vmem, size = 0x1000, scoped, tag = 'output window, operand 0, single buffered']
    %8 = vsyncpa [#allocation3], 0
    %9 = vsyncpa [#allocation6], 0
    %10 = vsyncpa [#allocation4], 0
    // Predicated region
    $region2: #{multiple_net_child_forward_padded.1} parent=1 // pred_check
      _
    $region3: #{multiple_net_child_forward_padded.1} parent=1 // pred_check_branch
      %12 = sbr.rel (0) target = $region5
    $region4: #{multiple_net_child_forward_padded.1} parent=1 // pred_region
      %s14 = ssub.s32 128, 128
      %15 = vsyncadd [#allocation3], %s14
      %s17 = sshll.u32 [#allocation2], 4
      %s18 = int_to_ptr.vmem [resolvable:$true] %s17
      %20 = dma.hbm_to_vmem [thread:$0]  %s0, 128, %s18, [#allocation3]
    $region5: #{multiple_net_child_forward_padded.1} parent=1 // pred_fallthru
      _
    // Predicated region
    $region6: #{multiple_net_child_forward_padded.1} parent=1 // pred_check
      _
    $region7: #{multiple_net_child_forward_padded.1} parent=1 // pred_check_branch
      %22 = sbr.rel (0) target = $region9
    $region8: #{multiple_net_child_forward_padded.1} parent=1 // pred_region
      %s24 = ssub.s32 256, 256
      %25 = vsyncadd [#allocation6], %s24
      %s26 = sshll.u32 [#allocation5], 4
      %s27 = int_to_ptr.vmem [resolvable:$true] %s26
      %32 = dma.hbm_to_vmem [thread:$0]  %s1, 256, %s27, [#allocation6], 128, 128, 8
    $region9: #{multiple_net_child_forward_padded.1} parent=1 // pred_fallthru
      _
    // Predicated region
    $region10: #{multiple_net_child_forward_padded.1} parent=1 // pred_check
      _
    $region11: #{multiple_net_child_forward_padded.1} parent=1 // pred_check_branch
      %34 = sbr.rel (0) target = $region13
    $region12: #{multiple_net_child_forward_padded.1} parent=1 // pred_region
      _
    $region13: #{multiple_net_child_forward_padded.1} parent=1 // pred_fallthru
      _
    // Predicated region
    $region14: #{multiple_net_child_forward_padded.1} parent=1 // pred_check
      _
    $region15: #{multiple_net_child_forward_padded.1} parent=1 // pred_check_branch
      %36 = sbr.rel (0) target = $region17
    $region16: #{multiple_net_child_forward_padded.1} parent=1 // pred_region
      %37 = dma.done [#allocation3], 128
    $region17: #{multiple_net_child_forward_padded.1} parent=1 // pred_fallthru
      _
    // Predicated region
    $region18: #{multiple_net_child_forward_padded.1} parent=1 // pred_check
      _
    $region19: #{multiple_net_child_forward_padded.1} parent=1 // pred_check_branch
      %39 = sbr.rel (0) target = $region21
    $region20: #{multiple_net_child_forward_padded.1} parent=1 // pred_region
      %40 = dma.done [#allocation6], 256
    $region21: #{multiple_net_child_forward_padded.1} parent=1 // pred_fallthru
      _
    %v41 = vld [vmem:[#allocation2] sm:$0xff]
    %v42 = vld [vmem:[#allocation5] sm:$0xff]
    %v43 = vld [vmem:[#allocation5 + $0x8] sm:$0x3]
    %v44 = vld [vmem:[%s2] sm:$0x1]
    %v46 = vlaneseq
    %v47 = vshrl.u32 %v46, 7
    %v48 = vsub.s32 0, %v47
    %v49 = vrot.slane %v44, %v48
    %vm51 = vcmask 80896
    %v53 = vsel %vm51, %v41, 0
    %vm55 = vcmask 1041408
    %v57 = vsel %vm55, %v43, 0
    %59 = vmatprep.subr.mxu0 0.0
    %60 = vmatpush1.msra.mxu0 0.0
    %61 = vmatprep.subr.mxu0 0.0
    %62 = vmatpush1.msra.mxu0 0.0
    %63 = vmatprep.subr.mxu0 0.0
    %64 = vmatpush1.msra.mxu0 0.0
    %65 = vmatprep.subr.mxu0 0.0
    %66 = vmatpush1.msra.mxu0 0.0
    %67 = vmatprep.subr.mxu0 0.0
    %68 = vmatpush1.msra.mxu0 0.0
    %69 = vmatprep.subr.mxu0 0.0
    %70 = vmatpush1.msra.mxu0 0.0
    %71 = vmatprep.subr.mxu0 0.0
    %72 = vmatpush1.msra.mxu0 0.0
    %73 = vmatprep.subr.mxu0 0.0
    %74 = vmatpush1.msra.mxu0 0.0
    %75 = vmatprep.subr.mxu0 0.0
    %76 = vmatpush1.msra.mxu0 0.0
    %77 = vmatprep.subr.mxu0 0.0
    %78 = vmatpush1.msra.mxu0 0.0
    %79 = vmatprep.subr.mxu0 0.0
    %80 = vmatpush1.msra.mxu0 0.0
    %81 = vmatprep.subr.mxu0 0.0
    %82 = vmatpush1.msra.mxu0 0.0
    %83 = vmatprep.subr.mxu0 0.0
    %84 = vmatpush1.msra.mxu0 0.0
    %85 = vmatprep.subr.mxu0 0.0
    %86 = vmatpush1.msra.mxu0 0.0
    %87 = vmatprep.subr.mxu0 0.0
    %88 = vmatpush1.msra.mxu0 %v57
    %89 = vmatprep.subr.mxu0 0.0
    %90 = vmatpush1.msra.mxu0 %v42
    %91 = vmatprep.subr.mxu0 0.0
    %92 = vmatpush2.msra.mxu0 0.0
    %93 = vmatprep.subr.mxu0 0.0
    %94 = vmatpush2.msra.mxu0 0.0
    %95 = vmatprep.subr.mxu0 0.0
    %96 = vmatpush2.msra.mxu0 0.0
    %97 = vmatprep.subr.mxu0 0.0
    %98 = vmatpush2.msra.mxu0 0.0
    %99 = vmatprep.subr.mxu0 0.0
    %100 = vmatpush2.msra.mxu0 0.0
    %101 = vmatprep.subr.mxu0 0.0
    %102 = vmatpush2.msra.mxu0 0.0
    %103 = vmatprep.subr.mxu0 0.0
    %104 = vmatpush2.msra.mxu0 0.0
    %105 = vmatprep.subr.mxu0 0.0
    %106 = vmatpush2.msra.mxu0 0.0
    %107 = vmatprep.subr.mxu0 0.0
    %108 = vmatpush2.msra.mxu0 0.0
    %109 = vmatprep.subr.mxu0 0.0
    %110 = vmatpush2.msra.mxu0 0.0
    %111 = vmatprep.subr.mxu0 0.0
    %112 = vmatpush2.msra.mxu0 0.0
    %113 = vmatprep.subr.mxu0 0.0
    %114 = vmatpush2.msra.mxu0 0.0
    %115 = vmatprep.subr.mxu0 0.0
    %116 = vmatpush2.msra.mxu0 0.0
    %117 = vmatprep.subr.mxu0 0.0
    %118 = vmatpush2.msra.mxu0 0.0
    %119 = vmatprep.subr.mxu0 0.0
    %120 = vmatpush2.msra.mxu0 0.0
    %121 = vmatprep.subr.mxu0 0.0
    %122 = vmatpush2.msra.mxu0 0.0
    %123 = vmatprep.mubr.f32.mxu0 0.0
    %124 = vmatmul.mubr.f32.gmra.mxu0 %v53
    %v125 = vpop.f32.mrf.mxu0
    %v126 = vadd.f32 %v49, %v125
    %v127 = vpop.f32.mrf.mxu0
    %128 = vdwg.mxu0
    %v129 = vmul.f32 %v126, 0.5
    %v130 = vtanh.pop %v129
    %v131 = vmul.f32 %v130, 0.5
    %v132 = vadd.f32 %v131, 0.5
    %133 = vst [vmem:[#allocation7] sm:$0xff] %v132
    // Predicated region
    $region22: #{multiple_net_child_forward_padded.1} parent=1 // pred_check
      _
    $region23: #{multiple_net_child_forward_padded.1} parent=1 // pred_check_branch
      %135 = sbr.rel (0) target = $region25
    $region24: #{multiple_net_child_forward_padded.1} parent=1 // pred_region
      %s137 = ssub.s32 128, 128
      %138 = vsyncadd [#allocation4], %s137
      %s140 = sshll.u32 [#allocation7], 4
      %s141 = int_to_ptr.vmem [resolvable:$true] %s140
      %143 = dma.vmem_to_hbm [thread:$0]  %s141, 128, %s3, [#allocation4]
    $region25: #{multiple_net_child_forward_padded.1} parent=1 // pred_fallthru
      _
    // Predicated region
    $region26: #{multiple_net_child_forward_padded.1} parent=1 // pred_check
      _
    $region27: #{multiple_net_child_forward_padded.1} parent=1 // pred_check_branch
      %145 = sbr.rel (0) target = $region29
    $region28: #{multiple_net_child_forward_padded.1} parent=1 // pred_region
      %146 = dma.done [#allocation4], 128
    $region29: #{multiple_net_child_forward_padded.1} parent=1 // pred_fallthru
      _
    %147 = vsyncpa [#allocation3], 1
    %148 = vsyncpa [#allocation6], 1
    %149 = vsyncpa [#allocation4], 1

</llo_original>
